<compile_context>
chip_gen: v5e
topology: v5e:2x2
jax: 0.10.0
libtpu: 0.0.40
codegen_flags: <defaults>
</compile_context>

<pallas_src>
import functools

import jax
import jax.numpy as jnp
from jax.experimental import pallas as pl
from jax.experimental.pallas import tpu as pltpu


def _make_outconv_kernel(c_in, c_out):
    """Build a kernel specialized (statically unrolled) for c_in/c_out."""

    def kernel(x_ref, w_ref, b_ref, o_ref):
        # x_ref: (C_in, t_hw)  VMEM   (lane axis = spatial)
        # w_ref: (C_out, C_in) SMEM   (scalars)
        # b_ref: (C_out,)      SMEM   (scalars)
        # o_ref: (C_out, t_hw) VMEM
        for co in range(c_out):
            acc = x_ref[0:1, :].astype(jnp.float32) * w_ref[co, 0]
            for ci in range(1, c_in):
                acc = acc + x_ref[ci:ci + 1, :].astype(jnp.float32) * w_ref[co, ci]
            o_ref[co:co + 1, :] = (acc + b_ref[co]).astype(o_ref.dtype)

    return kernel


def _pick_hw_tile(hw, n_batch, max_tile=8192):
    """Largest lane-aligned tile dividing HW; keep >=2 grid steps if possible."""
    if hw % 128 != 0:
        # Odd spatial sizes: use the full extent as one block (Pallas pads lanes).
        return hw
    cap = min(hw, max_tile)
    if n_batch < 2 and hw >= 256:
        # Leave at least two grid iterations so both v7x TensorCores get work.
        cap = min(cap, hw // 2)
    t = (cap // 128) * 128
    while t >= 128:
        if hw % t == 0:
            return t
        t -= 128
    return hw


@functools.partial(jax.jit, static_argnames=("max_hw_tile",))
def out_conv(x, weight, bias, *, max_hw_tile=8192):
    """1x1 Conv2d forward (nn.Conv2d(in_ch, out_ch, kernel_size=1)).

    x:      (N, C_in, H, W)
    weight: (C_out, C_in, 1, 1)
    bias:   (C_out,)
    returns (N, C_out, H, W)
    """
    N, C_in, H, W = x.shape
    C_out = weight.shape[0]
    HW = H * W

    x3 = x.reshape(N, C_in, HW)            # free reshape of contiguous NCHW
    w2d = weight.reshape(C_out, C_in)      # (C_out, C_in) scalars -> SMEM
    b1 = bias.reshape(C_out)               # (C_out,) scalars -> SMEM

    t_hw = _pick_hw_tile(HW, N, max_hw_tile)
    grid = (N, HW // t_hw)

    kernel = _make_outconv_kernel(C_in, C_out)

    out3 = pl.pallas_call(
        kernel,
        out_shape=jax.ShapeDtypeStruct((N, C_out, HW), x.dtype),
        grid_spec=pltpu.PrefetchScalarGridSpec(
            num_scalar_prefetch=0,
            grid=grid,
            in_specs=[
                # batch dim squeezed out; kernel sees (C_in, t_hw)
                pl.BlockSpec((None, C_in, t_hw), lambda n, j: (n, 0, j)),
                # weights / bias live in SMEM as scalars (no VMEM tile padding)
                pl.BlockSpec(memory_space=pltpu.MemorySpace.SMEM),
                pl.BlockSpec(memory_space=pltpu.MemorySpace.SMEM),
            ],
            out_specs=pl.BlockSpec((None, C_out, t_hw), lambda n, j: (n, 0, j)),
        ),
        compiler_params=pltpu.CompilerParams(
            dimension_semantics=("parallel", "parallel"),
        ),
    )(x3, w2d, b1)

    return out3.reshape(N, C_out, H, W)


def out_conv_ref(x, weight, bias):
    """Pure-JAX reference for nn.Conv2d(in_ch, out_ch, kernel_size=1)."""
    w2d = weight.reshape(weight.shape[0], weight.shape[1])  # (C_out, C_in)
    return jnp.einsum("nchw,oc->nohw", x, w2d) + bias[None, :, None, None]


if __name__ == "__main__":
    key = jax.random.PRNGKey(0)
    k_x, k_w, k_b = jax.random.split(key, 3)

    N, C_in, H, W = 2, 4, 16, 16
    C_out = 1  # "Final 1x1 convolution to get 1-channel output"

    x = jax.random.normal(k_x, (N, C_in, H, W), dtype=jnp.float32)
    bound = 1.0 / (C_in ** 0.5)
    weight = jax.random.uniform(
        k_w, (C_out, C_in, 1, 1), minval=-bound, maxval=bound, dtype=jnp.float32
    )
    bias = jax.random.uniform(
        k_b, (C_out,), minval=-bound, maxval=bound, dtype=jnp.float32
    )

    y = out_conv(x, weight, bias)
    y = jax.block_until_ready(y)

    y_ref = out_conv_ref(x, weight, bias)
    assert y.shape == (N, C_out, H, W), y.shape
    assert jnp.allclose(y, y_ref, atol=1e-5, rtol=1e-5), "mismatch vs reference"

    print("KERNEL_OK")
</pallas_src>

<mosaic_0001>
module attributes {stable_mosaic.version = 11 : i64} {
  func.func @kernel(%arg0: i32, %arg1: i32, %arg2: memref<1x4x256xf32, #tpu.memory_space<vmem>>, %arg3: memref<1x4xf32, #tpu.memory_space<smem>>, %arg4: memref<1xf32, #tpu.memory_space<smem>>, %arg5: memref<1x1x256xf32, #tpu.memory_space<vmem>>) attributes {dimension_semantics = [#tpu.dimension_semantics<parallel>, #tpu.dimension_semantics<parallel>], iteration_bounds = array<i64: 2, 1>, scalar_prefetch = 0 : i64, scratch_operands = 0 : i64, tpu.core_type = #tpu.core_type<tc>, window_params = [{transform_indices = @transform_0, window_bounds = array<i64: 1, 4, 256>}, {transform_indices = @transform_1, window_bounds = array<i64: 1, 4>}, {transform_indices = @transform_2, window_bounds = array<i64: 1>}, {transform_indices = @transform_3, window_bounds = array<i64: 1, 1, 256>}]} {
    %c0 = arith.constant 0 : index
    %c0_0 = arith.constant 0 : index
    %c0_1 = arith.constant 0 : index
    %0 = vector.load %arg2[%c0, %c0_0, %c0_1] : memref<1x4x256xf32, #tpu.memory_space<vmem>>, vector<1x1x256xf32>
    %1 = vector.shape_cast %0 : vector<1x1x256xf32> to vector<1x256xf32>
    %c0_2 = arith.constant 0 : index
    %c0_3 = arith.constant 0 : index
    %2 = memref.load %arg3[%c0_2, %c0_3] : memref<1x4xf32, #tpu.memory_space<smem>>
    %3 = vector.broadcast %2 : f32 to vector<1x256xf32>
    %4 = arith.mulf %1, %3 : vector<1x256xf32>
    %c0_4 = arith.constant 0 : index
    %c1 = arith.constant 1 : index
    %c0_5 = arith.constant 0 : index
    %5 = vector.load %arg2[%c0_4, %c1, %c0_5] : memref<1x4x256xf32, #tpu.memory_space<vmem>>, vector<1x1x256xf32>
    %6 = vector.shape_cast %5 : vector<1x1x256xf32> to vector<1x256xf32>
    %c0_6 = arith.constant 0 : index
    %c1_7 = arith.constant 1 : index
    %7 = memref.load %arg3[%c0_6, %c1_7] : memref<1x4xf32, #tpu.memory_space<smem>>
    %8 = vector.broadcast %7 : f32 to vector<1x256xf32>
    %9 = arith.mulf %6, %8 : vector<1x256xf32>
    %10 = arith.addf %4, %9 : vector<1x256xf32>
    %c0_8 = arith.constant 0 : index
    %c2 = arith.constant 2 : index
    %c0_9 = arith.constant 0 : index
    %11 = vector.load %arg2[%c0_8, %c2, %c0_9] : memref<1x4x256xf32, #tpu.memory_space<vmem>>, vector<1x1x256xf32>
    %12 = vector.shape_cast %11 : vector<1x1x256xf32> to vector<1x256xf32>
    %c0_10 = arith.constant 0 : index
    %c2_11 = arith.constant 2 : index
    %13 = memref.load %arg3[%c0_10, %c2_11] : memref<1x4xf32, #tpu.memory_space<smem>>
    %14 = vector.broadcast %13 : f32 to vector<1x256xf32>
    %15 = arith.mulf %12, %14 : vector<1x256xf32>
    %16 = arith.addf %10, %15 : vector<1x256xf32>
    %c0_12 = arith.constant 0 : index
    %c3 = arith.constant 3 : index
    %c0_13 = arith.constant 0 : index
    %17 = vector.load %arg2[%c0_12, %c3, %c0_13] : memref<1x4x256xf32, #tpu.memory_space<vmem>>, vector<1x1x256xf32>
    %18 = vector.shape_cast %17 : vector<1x1x256xf32> to vector<1x256xf32>
    %c0_14 = arith.constant 0 : index
    %c3_15 = arith.constant 3 : index
    %19 = memref.load %arg3[%c0_14, %c3_15] : memref<1x4xf32, #tpu.memory_space<smem>>
    %20 = vector.broadcast %19 : f32 to vector<1x256xf32>
    %21 = arith.mulf %18, %20 : vector<1x256xf32>
    %22 = arith.addf %16, %21 : vector<1x256xf32>
    %c0_16 = arith.constant 0 : index
    %23 = memref.load %arg4[%c0_16] : memref<1xf32, #tpu.memory_space<smem>>
    %24 = vector.broadcast %23 : f32 to vector<1x256xf32>
    %25 = arith.addf %22, %24 : vector<1x256xf32>
    %c0_17 = arith.constant 0 : index
    %c0_18 = arith.constant 0 : index
    %c0_19 = arith.constant 0 : index
    %26 = vector.load %arg5[%c0_17, %c0_18, %c0_19] : memref<1x1x256xf32, #tpu.memory_space<vmem>>, vector<1x1x256xf32>
    %27 = vector.shape_cast %26 : vector<1x1x256xf32> to vector<1x256xf32>
    %28 = vector.shape_cast %25 : vector<1x256xf32> to vector<1x1x256xf32>
    tpu.vector_store %arg5[%c0_17, %c0_18, %c0_19], %28 {strides = array<i32>} : memref<1x1x256xf32, #tpu.memory_space<vmem>>, vector<1x1x256xf32>,
    return
  }
  func.func @transform_0(%arg0: i32, %arg1: i32) -> (i32, i32, i32) {
    %c0_i32 = arith.constant 0 : i32
    %c0_i32_0 = arith.constant 0 : i32
    return %arg0, %c0_i32, %arg1 : i32, i32, i32
  }
  func.func @transform_1(%arg0: i32, %arg1: i32) -> (i32, i32) {
    %c0_i32 = arith.constant 0 : i32
    %c0_i32_0 = arith.constant 0 : i32
    %c0_i32_1 = arith.constant 0 : i32
    return %c0_i32, %c0_i32_0 : i32, i32
  }
  func.func @transform_2(%arg0: i32, %arg1: i32) -> i32 {
    %c0_i32 = arith.constant 0 : i32
    %c0_i32_0 = arith.constant 0 : i32
    return %c0_i32 : i32
  }
  func.func @transform_3(%arg0: i32, %arg1: i32) -> (i32, i32, i32) {
    %c0_i32 = arith.constant 0 : i32
    %c0_i32_0 = arith.constant 0 : i32
    return %arg0, %c0_i32, %arg1 : i32, i32, i32
  }
}

</mosaic_0001>

<llo_original>
// kernel: out_conv.1
$region0: #{out_conv.1}
  #allocation0 [shape = 'u32[]', space=smem, size = 0x4, offset = 0x4, fixed_abs, tag = 'smem constant byte address 0x4 - core index']
  #allocation1 [shape = 'u32[72,128]{1,0:T(1,128)}', space=vmem, size = 0x9000, scoped, tag = 'internal scratch']
  #allocation2 [shape = 'f32[1]{0:T(128)S(6)}', space=smem, size = 0x200, scoped, tag = 'scoped memory for out_conv.1']
  %s0 = inlined_call_operand.vmem [shape: f32[2,4,256], index: 0, kind: input, shape index: {}]
  %s1 = inlined_call_operand.vmem [shape: f32[1,4], index: 1, kind: input, shape index: {}]
  %s2 = inlined_call_operand.<no memory space> [shape: f32[1], index: 2, kind: input, shape index: {}]
  %s3 = inlined_call_operand.vmem [shape: f32[2,1,256], index: 3, kind: output, shape index: {}]
  %s4 = sld [smem:[#allocation0]]
  $region49: #{out_conv.1} parent=0
    _
  %s6 = ssub.s32 1, %s4
  %s7 = scalar_select 0, %s6, %s4
  %8 = sst [smem:[#allocation2]] %s2
  $region1: #{out_conv.1} parent=0
    #allocation3 [shape = 'u8[512]{0}', space=smem, size = 0x200, scoped, tag = 'input window, operand 1, single buffered']
    #allocation4 [shape = 's32[2]{0}', space=sflag, size = 0x8, scoped, tag = 'scoped memory for out_conv.1']
    %9 = vsyncpa [#allocation4], 0
    loop: start=0, step=1, limit=4
    $region2: #{out_conv.1} parent=1 // loop_pre_header
      _
    $region3: #{out_conv.1} parent=1 // loop_header
      %s11 = sphi 0, %s15
      %p12 = scmp.ge.s32.totalorder %s11, 4
      %s18 = sphi 0, %s30
      %s19 = sphi 0, %s26
      %s20 = sphi 0, %s18
      %s21 = sphi 0, %s19
      %s22 = sphi 0, %s20
      %s23 = sphi 0, %s21
      %s35 = sphi 0, %s37
      %s38 = sphi 0, %s35
      %s39 = sphi 0, %s38
      %s55 = sphi 0, %s39
      %s59 = sphi 0, %s59
      %s61 = sphi 0, %s59
      %s62 = sphi 0, %s61
      %s76 = sphi 0, %s62
      %s80 = sphi 0, %s80
      %s82 = sphi 0, %s80
      %s83 = sphi 0, %s82
      %s97 = sphi 0, %s83
      %s105 = sphi 0, %s107
      %s108 = sphi 0, %s105
      %s109 = sphi 0, %s108
      %s125 = sphi 0, %s109
    $region4: #{out_conv.1} parent=1 // loop_header_branch
      %14 = sbr.rel (%p12) target = $region8
    $region5: #{out_conv.1} parent=1 // loop_body
      %s16 = ssub.s32 %s11, 1
      %s17 = ssub.s32 %s11, 2
      %s24 = sadd.s32 1, %s19
      %p25 = scmp.ge.s32.totalorder %s24, 1
      %s26 = scalar_select %p25, 0, %s24
      %s27 = sadd.s32 1, %s18
      %s28 = scalar_select %p25, %s27, %s18
      %p29 = scmp.ge.s32.totalorder %s28, 2
      %s30 = scalar_select %p29, 0, %s28
      %s31 = ssub.s32 %s18, %s30
      %s32 = ssub.s32 %s19, %s26
      %s33 = sor.u32 %s31, %s32
      %p34 = scmp.eq.s32.totalorder %s33, 0
      %s36 = sadd.s32 %s35, 1
      %s37 = scalar_select %p34, %s35, %s36
      %p40 = pneg %p34
      %p41 = scmp.eq.s32.totalorder %s11, 1
      %p42 = por %p40, %p41
      %p43 = scmp.ne.s32.totalorder %s35, %s38
      %p44 = scmp.eq.s32.totalorder %s11, 0
      %p45 = por %p43, %p44
      %p46 = scmp.ne.s32.totalorder %s35, %s38
      %p47 = scmp.eq.s32.totalorder %s16, 1
      %p48 = por %p46, %p47
      %p49 = scmp.ne.s32.totalorder %s38, %s39
      %p50 = scmp.eq.s32.totalorder %s16, 0
      %p51 = por %p49, %p50
      %p52 = scmp.ne.s32.totalorder %s38, %s39
      %p53 = scmp.eq.s32.totalorder %s17, 1
      %p54 = por %p52, %p53
      %p56 = scmp.ne.s32.totalorder %s39, %s55
      %p57 = scmp.eq.s32.totalorder %s17, 0
      %p58 = por %p56, %p57
      %s60 = sadd.s32 %s59, 1
      %p63 = scmp.eq.s32.totalorder %s11, 1
      %p64 = scmp.ne.s32.totalorder %s59, %s61
      %p65 = scmp.eq.s32.totalorder %s11, 0
      %p66 = por %p64, %p65
      %p67 = scmp.ne.s32.totalorder %s59, %s61
      %p68 = scmp.eq.s32.totalorder %s16, 1
      %p69 = por %p67, %p68
      %p70 = scmp.ne.s32.totalorder %s61, %s62
      %p71 = scmp.eq.s32.totalorder %s16, 0
      %p72 = por %p70, %p71
      %p73 = scmp.ne.s32.totalorder %s61, %s62
      %p74 = scmp.eq.s32.totalorder %s17, 1
      %p75 = por %p73, %p74
      %p77 = scmp.ne.s32.totalorder %s62, %s76
      %p78 = scmp.eq.s32.totalorder %s17, 0
      %p79 = por %p77, %p78
      %s81 = sadd.s32 %s80, 1
      %p84 = scmp.eq.s32.totalorder %s11, 1
      %p85 = scmp.ne.s32.totalorder %s80, %s82
      %p86 = scmp.eq.s32.totalorder %s11, 0
      %p87 = por %p85, %p86
      %p88 = scmp.ne.s32.totalorder %s80, %s82
      %p89 = scmp.eq.s32.totalorder %s16, 1
      %p90 = por %p88, %p89
      %p91 = scmp.ne.s32.totalorder %s82, %s83
      %p92 = scmp.eq.s32.totalorder %s16, 0
      %p93 = por %p91, %p92
      %p94 = scmp.ne.s32.totalorder %s82, %s83
      %p95 = scmp.eq.s32.totalorder %s17, 1
      %p96 = por %p94, %p95
      %p98 = scmp.ne.s32.totalorder %s83, %s97
      %p99 = scmp.eq.s32.totalorder %s17, 0
      %p100 = por %p98, %p99
      %s101 = ssub.s32 %s18, %s30
      %s102 = ssub.s32 %s19, %s26
      %s103 = sor.u32 %s101, %s102
      %p104 = scmp.eq.s32.totalorder %s103, 0
      %s106 = sadd.s32 %s105, 1
      %s107 = scalar_select %p104, %s105, %s106
      %p110 = pneg %p104
      %p111 = scmp.eq.s32.totalorder %s11, 1
      %p112 = por %p110, %p111
      %p113 = scmp.ne.s32.totalorder %s105, %s108
      %p114 = scmp.eq.s32.totalorder %s11, 0
      %p115 = por %p113, %p114
      %p116 = scmp.ne.s32.totalorder %s105, %s108
      %p117 = scmp.eq.s32.totalorder %s16, 1
      %p118 = por %p116, %p117
      %p119 = scmp.ne.s32.totalorder %s108, %s109
      %p120 = scmp.eq.s32.totalorder %s16, 0
      %p121 = por %p119, %p120
      %p122 = scmp.ne.s32.totalorder %s108, %s109
      %p123 = scmp.eq.s32.totalorder %s17, 1
      %p124 = por %p122, %p123
      %p126 = scmp.ne.s32.totalorder %s109, %s125
      %p127 = scmp.eq.s32.totalorder %s17, 0
      %p128 = por %p126, %p127
      %p129 = scmp.le.s32.totalorder 1, %s11
      %p130 = scmp.lt.s32.totalorder %s11, 3
      %p131 = pnand %p129, %p130
      %p132 = pneg %p131
      // Predicated region
      $region9: #{out_conv.1} parent=5 // pred_check
        _
      $region10: #{out_conv.1} parent=5 // pred_check_branch
        %134 = sbr.rel (%p131) target = $region12
      $region11: #{out_conv.1} parent=5 // pred_region
        %s135 = ssub.s32 %s11, 1
        // Predicated region
        $region13: #{out_conv.1} parent=11 // pred_check
          %p136 = pneg %p72
        $region14: #{out_conv.1} parent=11 // pred_check_branch
          %138 = sbr.rel (%p136) target = $region16
        $region15: #{out_conv.1} parent=11 // pred_region
          %140 = vsyncadd [#allocation4], 0
          %s142 = sshll.u32 %s1, 4
          %s143 = int_to_ptr.vmem [resolvable:$true] %s142
          %145 = dma.vmem_to_smem %s143, 16, [#allocation3], [#allocation4]
        $region16: #{out_conv.1} parent=11 // pred_fallthru
          _
        // Predicated region
        $region17: #{out_conv.1} parent=11 // pred_check
          %p146 = pneg %p93
        $region18: #{out_conv.1} parent=11 // pred_check_branch
          %148 = sbr.rel (%p146) target = $region20
        $region19: #{out_conv.1} parent=11 // pred_region
          _
        $region20: #{out_conv.1} parent=11 // pred_fallthru
          _
      $region12: #{out_conv.1} parent=5 // pred_fallthru
        _
      %p149 = scmp.lt.s32.totalorder %s11, 2
      // Predicated region
      $region21: #{out_conv.1} parent=5 // pred_check
        %p150 = pneg %p149
      $region22: #{out_conv.1} parent=5 // pred_check_branch
        %152 = sbr.rel (%p150) target = $region24
      $region23: #{out_conv.1} parent=5 // pred_region
        // Predicated region
        $region25: #{out_conv.1} parent=23 // pred_check
          %p153 = pneg %p45
        $region26: #{out_conv.1} parent=23 // pred_check_branch
          %155 = sbr.rel (%p153) target = $region28
        $region27: #{out_conv.1} parent=23 // pred_region
          %s156 = smul.u32 2, %s19
          %p157 = scmp.lt.s32.totalorder %s18, 1
          %s158 = scalar_select %p157, %s18, 1
          %p159 = scmp.lt.s32.totalorder %s156, 1
          %s160 = scalar_select %p159, %s156, 1
          %s161 = smul.addr %s158, 2
          %s162 = sadd.s32 %s160, %s161
          %s163 = smul.addr %s162, 4
          %s164 = scalar_lea.vmem %s0, %s163
          %s165 = smul.u32 2, %s19
        $region28: #{out_conv.1} parent=23 // pred_fallthru
          _
      $region24: #{out_conv.1} parent=5 // pred_fallthru
        _
      %p166 = scmp.le.s32.totalorder 1, %s11
      %p167 = scmp.lt.s32.totalorder %s11, 3
      %p168 = pnand %p166, %p167
      %p169 = pneg %p168
      // Predicated region
      $region29: #{out_conv.1} parent=5 // pred_check
        _
      $region30: #{out_conv.1} parent=5 // pred_check_branch
        %171 = sbr.rel (%p168) target = $region32
      $region31: #{out_conv.1} parent=5 // pred_region
        %s172 = ssub.s32 %s11, 1
        // Predicated region
        $region33: #{out_conv.1} parent=31 // pred_check
          %p173 = pneg %p72
        $region34: #{out_conv.1} parent=31 // pred_check_branch
          %175 = sbr.rel (%p173) target = $region36
        $region35: #{out_conv.1} parent=31 // pred_region
          %177 = dma.done [#allocation4], 16
        $region36: #{out_conv.1} parent=31 // pred_fallthru
          _
        %178 = sfence
        %s179 = smul.u32 2, %s21
        %p180 = scmp.lt.s32.totalorder %s20, 1
        %s181 = scalar_select %p180, %s20, 1
        %p182 = scmp.lt.s32.totalorder %s179, 1
        %s183 = scalar_select %p182, %s179, 1
        %s184 = smul.addr %s181, 2
        %s185 = sadd.s32 %s183, %s184
        %s186 = smul.addr %s185, 4
        %s187 = scalar_lea.vmem %s0, %s186
        %p188 = pneg %p51
        %p189 = pneg %p48
        %p190 = pneg %p72
        %p191 = pneg %p69
        %p192 = pneg %p93
        %p193 = pneg %p90
        %p194 = pneg %p121
        %p195 = pneg %p118
        %s196 = smul.u32 2, %s21
        %p197 = scmp.lt.s32.totalorder %s20, 1
        %s198 = scalar_select %p197, %s20, 1
        %p199 = scmp.lt.s32.totalorder %s196, 1
        %s200 = scalar_select %p199, %s196, 1
        %s201 = smul.addr %s198, 2
        %s202 = sadd.s32 %s200, %s201
        %s203 = scalar_lea.vmem %s3, %s202
        %s204 = smul.u32 2, %s21
        %p205 = scmp.lt.s32.totalorder %s20, 1
        %s206 = scalar_select %p205, %s20, 1
        %p207 = scmp.lt.s32.totalorder %s204, 1
        %s208 = scalar_select %p207, %s204, 1
        %s209 = smul.addr %s206, 2
        %s210 = sadd.s32 %s208, %s209
        %s211 = smul.addr %s210, 4
        %s212 = scalar_lea.vmem %s0, %s211
        %s213 = smul.u32 2, %s21
        %s214 = smul.u32 2, %s21
        %p215 = scmp.lt.s32.totalorder %s20, 1
        %s216 = scalar_select %p215, %s20, 1
        %p217 = scmp.lt.s32.totalorder %s214, 1
        %s218 = scalar_select %p217, %s214, 1
        %s219 = smul.addr %s216, 2
        %s220 = sadd.s32 %s218, %s219
        %s221 = scalar_lea.vmem %s3, %s220
        %s222 = smul.u32 2, %s21
        %v223 = vld [vmem:[%s212] ss:$4 sm:$0x3]
        %s224 = sld [smem:[#allocation3]]
        %v225 = vstv %s224
        %v226 = vmul.f32 %v223, %v225
        %s227 = scalar_lea.vmem %s212, 1
        %v228 = vld [vmem:[%s227] ss:$4 sm:$0x3]
        %s229 = sld [smem:[#allocation3 + $0x1]]
        %v230 = vstv %s229
        %v231 = vmul.f32 %v228, %v230
        %v232 = vadd.f32 %v226, %v231
        %s233 = scalar_lea.vmem %s212, 2
        %v234 = vld [vmem:[%s233] ss:$4 sm:$0x3]
        %s235 = sld [smem:[#allocation3 + $0x2]]
        %v236 = vstv %s235
        %v237 = vmul.f32 %v234, %v236
        %v238 = vadd.f32 %v232, %v237
        %s239 = scalar_lea.vmem %s212, 3
        %v240 = vld [vmem:[%s239] ss:$4 sm:$0x3]
        %s241 = sld [smem:[#allocation3 + $0x3]]
        %v242 = vstv %s241
        %v243 = vmul.f32 %v240, %v242
        %v244 = vadd.f32 %v238, %v243
        %s245 = sld [smem:[#allocation2]]
        %v246 = vstv %s245
        %v247 = vadd.f32 %v244, %v246
        %v248 = vlaneseq
        %vm249 = vcmp.ge.s32.totalorder %v248, 0
        %vm250 = vcmp.lt.s32.totalorder %v248, 256
        %vm251 = vmand %vm249, %vm250
        %252 = vst.msk [vmem:[%s221] sm:$0x3] %vm251, %v247
        %s253 = smul.u32 2, %s21
        %p254 = scmp.lt.s32.totalorder %s20, 1
        %s255 = scalar_select %p254, %s20, 1
        %p256 = scmp.lt.s32.totalorder %s253, 1
        %s257 = scalar_select %p256, %s253, 1
        %s258 = smul.addr %s255, 2
        %s259 = sadd.s32 %s257, %s258
        %s260 = scalar_lea.vmem %s3, %s259
        // Predicated region
        $region37: #{out_conv.1} parent=31 // pred_check
          %p261 = pneg %p118
        $region38: #{out_conv.1} parent=31 // pred_check_branch
          %263 = sbr.rel (%p261) target = $region40
        $region39: #{out_conv.1} parent=31 // pred_region
          %s264 = smul.u32 2, %s21
        $region40: #{out_conv.1} parent=31 // pred_fallthru
          _
      $region32: #{out_conv.1} parent=5 // pred_fallthru
        _
      %p265 = scmp.le.s32.totalorder 2, %s11
      // Predicated region
      $region41: #{out_conv.1} parent=5 // pred_check
        %p266 = pneg %p265
      $region42: #{out_conv.1} parent=5 // pred_check_branch
        %268 = sbr.rel (%p266) target = $region44
      $region43: #{out_conv.1} parent=5 // pred_region
        %s269 = ssub.s32 %s11, 2
        // Predicated region
        $region45: #{out_conv.1} parent=43 // pred_check
          %p270 = pneg %p124
        $region46: #{out_conv.1} parent=43 // pred_check_branch
          %272 = sbr.rel (%p270) target = $region48
        $region47: #{out_conv.1} parent=43 // pred_region
          %s273 = smul.u32 2, %s23
          %p274 = scmp.lt.s32.totalorder %s22, 1
          %s275 = scalar_select %p274, %s22, 1
          %p276 = scmp.lt.s32.totalorder %s273, 1
          %s277 = scalar_select %p276, %s273, 1
          %s278 = smul.addr %s275, 2
          %s279 = sadd.s32 %s277, %s278
          %s280 = scalar_lea.vmem %s3, %s279
        $region48: #{out_conv.1} parent=43 // pred_fallthru
          _
      $region44: #{out_conv.1} parent=5 // pred_fallthru
        _
    $region6: #{out_conv.1} parent=1 // loop_footer
      %s15 = sadd.s32 1, %s11
    $region7: #{out_conv.1} parent=1 // loop_footer_branch
      %10 = sbr.rel target = $region3
    $region8: #{out_conv.1} parent=1 // loop_exit
      _
    %281 = vsyncpa [#allocation4], 1
    %s282 = scalar_lea.sflag [#allocation4], 1
    %283 = vsyncpa %s282, 1

</llo_original>
